<compile_context>
chip_gen: v7x
topology: tpu7x:2x2x1
jax: 0.10.0
libtpu: 0.0.40
codegen_flags: <defaults>
</compile_context>

<pallas_src>
import functools

import jax
import jax.numpy as jnp
from jax.experimental import pallas as pl
from jax.experimental.pallas import tpu as pltpu

EPS = 1e-5


def _basic_block_kernel(x_ref, g1_ref, b1_ref, w1_ref, g2_ref, b2_ref, w2_ref,
                        out_ref, *, C, H, W, conv_dtype):
    # x_ref/out_ref : (N*H, W*C) f32, lane-dense layout (lane = w*C + c)
    # gK/bK         : (1, W*C)   f32, per-channel affine params tiled across W
    # wK            : (3*W*C, W*C) conv_dtype, banded block-Toeplitz conv weight
    ROWS, WC = x_ref.shape
    inv_count = 1.0 / float(ROWS * W)            # ROWS * W = N * H * W

    x2 = x_ref[...]

    # Row-position masks for the +/-1 H shifts (computed once, reused by both convs).
    h_ids = jax.lax.broadcasted_iota(jnp.int32, (ROWS, WC), 0) % H
    valid_up = h_ids != 0                        # h-1 exists inside the same image
    valid_dn = h_ids != (H - 1)                  # h+1 exists inside the same image

    def lane_group_sum(row):
        # row: (1, W*C).  Cyclic roll tree over the W lane-groups of stride C:
        # result lane l = sum over w of row[0, w*C + (l % C)], i.e. the
        # per-channel total already replicated across every w position.
        t = row
        s = C
        while s < WC:
            t = t + pltpu.roll(t, s, axis=1)
            s *= 2
        return t

    def bn_relu(v, g, b):
        # Training-mode BatchNorm2d: biased batch stats over (N, H, W) per
        # channel (= lane % C), two-pass variance, then ReLU.
        mean = lane_group_sum(jnp.sum(v, axis=0, keepdims=True)) * inv_count
        vc = v - mean
        var = lane_group_sum(jnp.sum(vc * vc, axis=0, keepdims=True)) * inv_count
        y = vc * jax.lax.rsqrt(var + EPS) * g + b
        return jnp.maximum(y, 0.0)

    def conv3x3(v, w_ref):
        # 3x3 / stride 1 / pad 1 conv as ONE matmul.  The three H taps are
        # sublane rolls (+ row masks); the W taps and W zero padding live inside
        # the banded weight, so no lane shifts and no padded scratch are needed.
        up = jnp.where(valid_up, pltpu.roll(v, 1, axis=0), 0.0)          # v at h-1
        dn = jnp.where(valid_dn, pltpu.roll(v, ROWS - 1, axis=0), 0.0)   # v at h+1
        taps = jnp.concatenate([up, v, dn], axis=1).astype(conv_dtype)   # (ROWS, 3*WC)
        return jnp.dot(taps, w_ref[...], preferred_element_type=jnp.float32)

    h1 = bn_relu(x2, g1_ref[...], b1_ref[...])
    c1 = conv3x3(h1, w1_ref)
    h2 = bn_relu(c1, g2_ref[...], b2_ref[...])
    c2 = conv3x3(h2, w2_ref)

    out_ref[...] = (c2 + x2).astype(out_ref.dtype)   # residual add (downsample=None)


def prepare_block_params(params, W, conv_dtype=jnp.float32):
    """One-time layout transform of BasicBlock params for the kernel.

    Per the perf review this is pure constant folding and belongs at param-init
    time, not on the per-call path.
    """
    C = params["g1"].shape[0]

    def banded_conv_weight(w_oihw):
        # OIHW -> HWIO, then for each kh build sum_kw kron(D_dw, K[kh, kw]) where
        # D_dw is the (W, W) off-diagonal selector encoding the W-shift dw=kw-1
        # (and, implicitly, the zero padding at the W borders).
        k = jnp.transpose(w_oihw, (2, 3, 1, 0)).astype(jnp.float32)     # (3,3,Ci,Co)
        blocks = []
        for kh in range(3):
            m = None
            for kw in range(3):
                band = jnp.kron(jnp.eye(W, k=-(kw - 1), dtype=jnp.float32), k[kh, kw])
                m = band if m is None else m + band
            blocks.append(m)
        return jnp.concatenate(blocks, axis=0).astype(conv_dtype)       # (3*W*C, W*C)

    def tile_lanes(v):
        return jnp.tile(v.astype(jnp.float32), W).reshape(1, W * C)     # lane l -> v[l % C]

    return dict(
        g1=tile_lanes(params["g1"]), b1=tile_lanes(params["b1"]),
        w1=banded_conv_weight(params["w1"]),
        g2=tile_lanes(params["g2"]), b2=tile_lanes(params["b2"]),
        w2=banded_conv_weight(params["w2"]),
    )


def basic_block_forward_nhwc(x_nhwc, kparams):
    """x_nhwc: (N, H, W, C) f32; kparams from prepare_block_params(). Returns NHWC."""
    N, H, W, C = x_nhwc.shape
    assert W & (W - 1) == 0, "W must be a power of two (lane roll-tree reduction)"
    ROWS, WC = N * H, W * C
    conv_dtype = kparams["w1"].dtype

    x2 = x_nhwc.reshape(ROWS, WC)   # collapse of contiguous trailing dims: free in HBM

    kernel = functools.partial(_basic_block_kernel, C=C, H=H, W=W,
                               conv_dtype=conv_dtype)
    vmem = pl.BlockSpec(memory_space=pltpu.MemorySpace.VMEM)
    out2 = pl.pallas_call(
        kernel,
        out_shape=jax.ShapeDtypeStruct((ROWS, WC), x_nhwc.dtype),
        in_specs=[vmem] * 7,
        out_specs=vmem,
    )(x2, kparams["g1"], kparams["b1"], kparams["w1"],
      kparams["g2"], kparams["b2"], kparams["w2"])
    return out2.reshape(N, H, W, C)


def basic_block_forward_nchw(x_nchw, params, *, conv_dtype=jnp.float32):
    """Drop-in NCHW interface matching the PyTorch module.

    NOTE(perf): the layout transposes + weight banding here run on every call;
    in a real network keep activations NHWC end-to-end and call
    prepare_block_params once at init (as done in __main__).
    """
    N, C, H, W = x_nchw.shape
    kparams = prepare_block_params(params, W, conv_dtype=conv_dtype)
    x_nhwc = jnp.transpose(x_nchw, (0, 2, 3, 1))
    out = basic_block_forward_nhwc(x_nhwc, kparams)
    return jnp.transpose(out, (0, 3, 1, 2))


def ref_forward(x, params, conv_dtype=jnp.float32):
    """Pure-JAX reference in NCHW, mirrors PyTorch BasicBlock.forward."""
    g1, b1, w1 = params["g1"], params["b1"], params["w1"]
    g2, b2, w2 = params["g2"], params["b2"], params["w2"]

    def bn(v, g, b):
        mean = jnp.mean(v, axis=(0, 2, 3), keepdims=True)
        var = jnp.mean((v - mean) ** 2, axis=(0, 2, 3), keepdims=True)
        return ((v - mean) * jax.lax.rsqrt(var + EPS)
                * g.reshape(1, -1, 1, 1) + b.reshape(1, -1, 1, 1))

    def conv(v, w):
        return jax.lax.conv_general_dilated(
            v.astype(conv_dtype), w.astype(conv_dtype), (1, 1), ((1, 1), (1, 1)),
            dimension_numbers=("NCHW", "OIHW", "NCHW"),
            preferred_element_type=jnp.float32)

    h = jnp.maximum(bn(x, g1, b1), 0.0)
    h = conv(h, w1)
    h = jnp.maximum(bn(h, g2, b2), 0.0)
    h = conv(h, w2)
    return h + x


if __name__ == "__main__":
    # inplanes == planes == 8, stride=1, downsample=None.  W*C = 16*8 = 128, so
    # the lane-dense working layout is exactly one (8,128) lane tile wide.
    N, C, H, W = 2, 8, 16, 16
    key = jax.random.PRNGKey(0)
    kx, kw1, kw2, kg1, kb1, kg2, kb2 = jax.random.split(key, 7)

    x = jax.random.normal(kx, (N, C, H, W), jnp.float32)
    params = dict(
        g1=1.0 + 0.1 * jax.random.normal(kg1, (C,), jnp.float32),
        b1=0.1 * jax.random.normal(kb1, (C,), jnp.float32),
        w1=jax.random.normal(kw1, (C, C, 3, 3), jnp.float32) * (2.0 / (9 * C)) ** 0.5,
        g2=1.0 + 0.1 * jax.random.normal(kg2, (C,), jnp.float32),
        b2=0.1 * jax.random.normal(kb2, (C,), jnp.float32),
        w2=jax.random.normal(kw2, (C, C, 3, 3), jnp.float32) * (2.0 / (9 * C)) ** 0.5,
    )

    # Layout changes done ONCE at the network boundary (not per call).
    x_nhwc = jnp.transpose(x, (0, 2, 3, 1))

    # --- f32 MXU operands -------------------------------------------------
    kp32 = prepare_block_params(params, W)                    # one-time weight prep
    out32 = jax.block_until_ready(basic_block_forward_nhwc(x_nhwc, kp32))
    out32_nchw = jnp.transpose(out32, (0, 3, 1, 2))
    assert out32_nchw.shape == (N, C, H, W)
    ref32 = ref_forward(x, params)
    err32 = float(jnp.max(jnp.abs(out32_nchw - ref32)))
    if not bool(jnp.allclose(out32_nchw, ref32, atol=2e-2, rtol=2e-2)):
        raise AssertionError(f"f32 path mismatch vs reference, max abs err={err32}")

    # --- bf16 MXU operands (recommended default at real sizes) -------------
    # Compared against a reference that quantizes the conv operands identically,
    # so the check stays tight (only accumulation-order differences remain).
    kpbf = prepare_block_params(params, W, conv_dtype=jnp.bfloat16)
    outbf = jax.block_until_ready(basic_block_forward_nhwc(x_nhwc, kpbf))
    outbf_nchw = jnp.transpose(outbf, (0, 3, 1, 2))
    refbf = ref_forward(x, params, conv_dtype=jnp.bfloat16)
    errbf = float(jnp.max(jnp.abs(outbf_nchw - refbf)))
    if not bool(jnp.allclose(outbf_nchw, refbf, atol=1e-2, rtol=1e-2)):
        raise AssertionError(f"bf16 path mismatch vs bf16 reference, max abs err={errbf}")

    print("KERNEL_OK")
</pallas_src>

<mosaic_0001>
module attributes {stable_mosaic.version = 11 : i64} {
  func.func @_basic_block_kernel(%arg0: memref<32x128xf32, #tpu.memory_space<vmem>>, %arg1: memref<1x128xf32, #tpu.memory_space<vmem>>, %arg2: memref<1x128xf32, #tpu.memory_space<vmem>>, %arg3: memref<384x128xf32, #tpu.memory_space<vmem>>, %arg4: memref<1x128xf32, #tpu.memory_space<vmem>>, %arg5: memref<1x128xf32, #tpu.memory_space<vmem>>, %arg6: memref<384x128xf32, #tpu.memory_space<vmem>>, %arg7: memref<32x128xf32, #tpu.memory_space<vmem>>) attributes {dimension_semantics = [], scalar_prefetch = 0 : i64, scratch_operands = 0 : i64, tpu.core_type = #tpu.core_type<tc>} {
    %c0 = arith.constant 0 : index
    %c0_0 = arith.constant 0 : index
    %0 = vector.load %arg0[%c0, %c0_0] : memref<32x128xf32, #tpu.memory_space<vmem>>, vector<32x128xf32>
    %1 = tpu.iota {dimensions = array<i32: 0>} : vector<32x128xi32>
    %c16_i32 = arith.constant 16 : i32
    %c0_i32 = arith.constant 0 : i32
    %2 = arith.cmpi eq, %c16_i32, %c0_i32 : i32
    %c1_i32 = arith.constant 1 : i32
    %3 = arith.select %2, %c1_i32, %c16_i32 : i32
    %4 = vector.broadcast %3 : i32 to vector<32x128xi32>
    %5 = arith.remsi %1, %4 : vector<32x128xi32>
    %c0_i32_1 = arith.constant 0 : i32
    %6 = vector.broadcast %c0_i32_1 : i32 to vector<32x128xi32>
    %7 = arith.cmpi ne, %5, %6 : vector<32x128xi32>
    %c0_i32_2 = arith.constant 0 : i32
    %8 = vector.broadcast %c0_i32_2 : i32 to vector<32x128xi32>
    %9 = arith.cmpi slt, %5, %8 : vector<32x128xi32>
    %c0_i32_3 = arith.constant 0 : i32
    %10 = arith.cmpi slt, %3, %c0_i32_3 : i32
    %11 = vector.broadcast %10 : i1 to vector<32x128xi1>
    %12 = vector.broadcast %11 : vector<32x128xi1> to vector<32x128xi1>
    %13 = arith.xori %9, %12 : vector<32x128xi1>
    %14 = arith.andi %13, %7 : vector<32x128xi1>
    %15 = vector.broadcast %3 : i32 to vector<32x128xi32>
    %16 = arith.addi %5, %15 : vector<32x128xi32>
    %17 = arith.select %14, %16, %5 : vector<32x128xi1>, vector<32x128xi32>
    %c0_i32_4 = arith.constant 0 : i32
    %18 = vector.broadcast %c0_i32_4 : i32 to vector<32x128xi32>
    %19 = arith.cmpi ne, %17, %18 : vector<32x128xi32>
    %c15_i32 = arith.constant 15 : i32
    %20 = vector.broadcast %c15_i32 : i32 to vector<32x128xi32>
    %21 = arith.cmpi ne, %17, %20 : vector<32x128xi32>
    %c0_5 = arith.constant 0 : index
    %c0_6 = arith.constant 0 : index
    %22 = vector.load %arg1[%c0_5, %c0_6] : memref<1x128xf32, #tpu.memory_space<vmem>>, vector<1x128xf32>
    %c0_7 = arith.constant 0 : index
    %c0_8 = arith.constant 0 : index
    %23 = vector.load %arg2[%c0_7, %c0_8] : memref<1x128xf32, #tpu.memory_space<vmem>>, vector<1x128xf32>
    %cst = arith.constant dense<0.000000e+00> : vector<128xf32>
    %24 = vector.multi_reduction <add>, %0, %cst [0] : vector<32x128xf32> to vector<128xf32>
    %25 = vector.shape_cast %24 : vector<128xf32> to vector<1x128xf32>
    %c8_i32 = arith.constant 8 : i32
    %26 = tpu.dynamic_rotate %25 by %c8_i32 dim 1 : vector<1x128xf32>, i32 -> vector<1x128xf32>
    %27 = arith.addf %25, %26 : vector<1x128xf32>
    %c16_i32_9 = arith.constant 16 : i32
    %28 = tpu.dynamic_rotate %27 by %c16_i32_9 dim 1 : vector<1x128xf32>, i32 -> vector<1x128xf32>
    %29 = arith.addf %27, %28 : vector<1x128xf32>
    %c32_i32 = arith.constant 32 : i32
    %30 = tpu.dynamic_rotate %29 by %c32_i32 dim 1 : vector<1x128xf32>, i32 -> vector<1x128xf32>
    %31 = arith.addf %29, %30 : vector<1x128xf32>
    %c64_i32 = arith.constant 64 : i32
    %32 = tpu.dynamic_rotate %31 by %c64_i32 dim 1 : vector<1x128xf32>, i32 -> vector<1x128xf32>
    %33 = arith.addf %31, %32 : vector<1x128xf32>
    %cst_10 = arith.constant 0.001953125 : f32
    %34 = vector.broadcast %cst_10 : f32 to vector<1x128xf32>
    %35 = arith.mulf %33, %34 : vector<1x128xf32>
    %36 = vector.broadcast %35 : vector<1x128xf32> to vector<32x128xf32>
    %37 = arith.subf %0, %36 : vector<32x128xf32>
    %38 = arith.mulf %37, %37 : vector<32x128xf32>
    %cst_11 = arith.constant dense<0.000000e+00> : vector<128xf32>
    %39 = vector.multi_reduction <add>, %38, %cst_11 [0] : vector<32x128xf32> to vector<128xf32>
    %40 = vector.shape_cast %39 : vector<128xf32> to vector<1x128xf32>
    %c8_i32_12 = arith.constant 8 : i32
    %41 = tpu.dynamic_rotate %40 by %c8_i32_12 dim 1 : vector<1x128xf32>, i32 -> vector<1x128xf32>
    %42 = arith.addf %40, %41 : vector<1x128xf32>
    %c16_i32_13 = arith.constant 16 : i32
    %43 = tpu.dynamic_rotate %42 by %c16_i32_13 dim 1 : vector<1x128xf32>, i32 -> vector<1x128xf32>
    %44 = arith.addf %42, %43 : vector<1x128xf32>
    %c32_i32_14 = arith.constant 32 : i32
    %45 = tpu.dynamic_rotate %44 by %c32_i32_14 dim 1 : vector<1x128xf32>, i32 -> vector<1x128xf32>
    %46 = arith.addf %44, %45 : vector<1x128xf32>
    %c64_i32_15 = arith.constant 64 : i32
    %47 = tpu.dynamic_rotate %46 by %c64_i32_15 dim 1 : vector<1x128xf32>, i32 -> vector<1x128xf32>
    %48 = arith.addf %46, %47 : vector<1x128xf32>
    %cst_16 = arith.constant 0.001953125 : f32
    %49 = vector.broadcast %cst_16 : f32 to vector<1x128xf32>
    %50 = arith.mulf %48, %49 : vector<1x128xf32>
    %cst_17 = arith.constant 9.99999974E-6 : f32
    %51 = vector.broadcast %cst_17 : f32 to vector<1x128xf32>
    %52 = arith.addf %50, %51 : vector<1x128xf32>
    %53 = math.rsqrt %52 : vector<1x128xf32>
    %54 = vector.broadcast %53 : vector<1x128xf32> to vector<32x128xf32>
    %55 = arith.mulf %37, %54 : vector<32x128xf32>
    %56 = vector.broadcast %22 : vector<1x128xf32> to vector<32x128xf32>
    %57 = arith.mulf %55, %56 : vector<32x128xf32>
    %58 = vector.broadcast %23 : vector<1x128xf32> to vector<32x128xf32>
    %59 = arith.addf %57, %58 : vector<32x128xf32>
    %cst_18 = arith.constant 0.000000e+00 : f32
    %60 = vector.broadcast %cst_18 : f32 to vector<32x128xf32>
    %61 = arith.maximumf %59, %60 : vector<32x128xf32>
    %c1_i32_19 = arith.constant 1 : i32
    %62 = tpu.dynamic_rotate %61 by %c1_i32_19 dim 0 : vector<32x128xf32>, i32 -> vector<32x128xf32>
    %cst_20 = arith.constant 0.000000e+00 : f32
    %63 = vector.broadcast %cst_20 : f32 to vector<32x128xf32>
    %64 = arith.select %19, %62, %63 : vector<32x128xi1>, vector<32x128xf32>
    %c31_i32 = arith.constant 31 : i32
    %65 = tpu.dynamic_rotate %61 by %c31_i32 dim 0 : vector<32x128xf32>, i32 -> vector<32x128xf32>
    %cst_21 = arith.constant 0.000000e+00 : f32
    %66 = vector.broadcast %cst_21 : f32 to vector<32x128xf32>
    %67 = arith.select %21, %65, %66 : vector<32x128xi1>, vector<32x128xf32>
    %68 = tpu.concatenate %64, %61, %67 in 1 : vector<32x128xf32>, vector<32x128xf32>, vector<32x128xf32> -> vector<32x384xf32>
    %c0_22 = arith.constant 0 : index
    %c0_23 = arith.constant 0 : index
    %69 = vector.load %arg3[%c0_22, %c0_23] : memref<384x128xf32, #tpu.memory_space<vmem>>, vector<384x128xf32>
    %cst_24 = arith.constant dense<0.000000e+00> : vector<32x128xf32>
    %70 = tpu.matmul %68, %69, %cst_24 {dimension_numbers = #tpu.dot_dimension_numbers<[1], [0], [0], [1], [0, 0, 1, 1], [], []>} : vector<32x384xf32>, vector<384x128xf32>, vector<32x128xf32> -> vector<32x128xf32>
    %c0_25 = arith.constant 0 : index
    %c0_26 = arith.constant 0 : index
    %71 = vector.load %arg4[%c0_25, %c0_26] : memref<1x128xf32, #tpu.memory_space<vmem>>, vector<1x128xf32>
    %c0_27 = arith.constant 0 : index
    %c0_28 = arith.constant 0 : index
    %72 = vector.load %arg5[%c0_27, %c0_28] : memref<1x128xf32, #tpu.memory_space<vmem>>, vector<1x128xf32>
    %cst_29 = arith.constant dense<0.000000e+00> : vector<128xf32>
    %73 = vector.multi_reduction <add>, %70, %cst_29 [0] : vector<32x128xf32> to vector<128xf32>
    %74 = vector.shape_cast %73 : vector<128xf32> to vector<1x128xf32>
    %c8_i32_30 = arith.constant 8 : i32
    %75 = tpu.dynamic_rotate %74 by %c8_i32_30 dim 1 : vector<1x128xf32>, i32 -> vector<1x128xf32>
    %76 = arith.addf %74, %75 : vector<1x128xf32>
    %c16_i32_31 = arith.constant 16 : i32
    %77 = tpu.dynamic_rotate %76 by %c16_i32_31 dim 1 : vector<1x128xf32>, i32 -> vector<1x128xf32>
    %78 = arith.addf %76, %77 : vector<1x128xf32>
    %c32_i32_32 = arith.constant 32 : i32
    %79 = tpu.dynamic_rotate %78 by %c32_i32_32 dim 1 : vector<1x128xf32>, i32 -> vector<1x128xf32>
    %80 = arith.addf %78, %79 : vector<1x128xf32>
    %c64_i32_33 = arith.constant 64 : i32
    %81 = tpu.dynamic_rotate %80 by %c64_i32_33 dim 1 : vector<1x128xf32>, i32 -> vector<1x128xf32>
    %82 = arith.addf %80, %81 : vector<1x128xf32>
    %cst_34 = arith.constant 0.001953125 : f32
    %83 = vector.broadcast %cst_34 : f32 to vector<1x128xf32>
    %84 = arith.mulf %82, %83 : vector<1x128xf32>
    %85 = vector.broadcast %84 : vector<1x128xf32> to vector<32x128xf32>
    %86 = arith.subf %70, %85 : vector<32x128xf32>
    %87 = arith.mulf %86, %86 : vector<32x128xf32>
    %cst_35 = arith.constant dense<0.000000e+00> : vector<128xf32>
    %88 = vector.multi_reduction <add>, %87, %cst_35 [0] : vector<32x128xf32> to vector<128xf32>
    %89 = vector.shape_cast %88 : vector<128xf32> to vector<1x128xf32>
    %c8_i32_36 = arith.constant 8 : i32
    %90 = tpu.dynamic_rotate %89 by %c8_i32_36 dim 1 : vector<1x128xf32>, i32 -> vector<1x128xf32>
    %91 = arith.addf %89, %90 : vector<1x128xf32>
    %c16_i32_37 = arith.constant 16 : i32
    %92 = tpu.dynamic_rotate %91 by %c16_i32_37 dim 1 : vector<1x128xf32>, i32 -> vector<1x128xf32>
    %93 = arith.addf %91, %92 : vector<1x128xf32>
    %c32_i32_38 = arith.constant 32 : i32
    %94 = tpu.dynamic_rotate %93 by %c32_i32_38 dim 1 : vector<1x128xf32>, i32 -> vector<1x128xf32>
    %95 = arith.addf %93, %94 : vector<1x128xf32>
    %c64_i32_39 = arith.constant 64 : i32
    %96 = tpu.dynamic_rotate %95 by %c64_i32_39 dim 1 : vector<1x128xf32>, i32 -> vector<1x128xf32>
    %97 = arith.addf %95, %96 : vector<1x128xf32>
    %cst_40 = arith.constant 0.001953125 : f32
    %98 = vector.broadcast %cst_40 : f32 to vector<1x128xf32>
    %99 = arith.mulf %97, %98 : vector<1x128xf32>
    %cst_41 = arith.constant 9.99999974E-6 : f32
    %100 = vector.broadcast %cst_41 : f32 to vector<1x128xf32>
    %101 = arith.addf %99, %100 : vector<1x128xf32>
    %102 = math.rsqrt %101 : vector<1x128xf32>
    %103 = vector.broadcast %102 : vector<1x128xf32> to vector<32x128xf32>
    %104 = arith.mulf %86, %103 : vector<32x128xf32>
    %105 = vector.broadcast %71 : vector<1x128xf32> to vector<32x128xf32>
    %106 = arith.mulf %104, %105 : vector<32x128xf32>
    %107 = vector.broadcast %72 : vector<1x128xf32> to vector<32x128xf32>
    %108 = arith.addf %106, %107 : vector<32x128xf32>
    %cst_42 = arith.constant 0.000000e+00 : f32
    %109 = vector.broadcast %cst_42 : f32 to vector<32x128xf32>
    %110 = arith.maximumf %108, %109 : vector<32x128xf32>
    %c1_i32_43 = arith.constant 1 : i32
    %111 = tpu.dynamic_rotate %110 by %c1_i32_43 dim 0 : vector<32x128xf32>, i32 -> vector<32x128xf32>
    %cst_44 = arith.constant 0.000000e+00 : f32
    %112 = vector.broadcast %cst_44 : f32 to vector<32x128xf32>
    %113 = arith.select %19, %111, %112 : vector<32x128xi1>, vector<32x128xf32>
    %c31_i32_45 = arith.constant 31 : i32
    %114 = tpu.dynamic_rotate %110 by %c31_i32_45 dim 0 : vector<32x128xf32>, i32 -> vector<32x128xf32>
    %cst_46 = arith.constant 0.000000e+00 : f32
    %115 = vector.broadcast %cst_46 : f32 to vector<32x128xf32>
    %116 = arith.select %21, %114, %115 : vector<32x128xi1>, vector<32x128xf32>
    %117 = tpu.concatenate %113, %110, %116 in 1 : vector<32x128xf32>, vector<32x128xf32>, vector<32x128xf32> -> vector<32x384xf32>
    %c0_47 = arith.constant 0 : index
    %c0_48 = arith.constant 0 : index
    %118 = vector.load %arg6[%c0_47, %c0_48] : memref<384x128xf32, #tpu.memory_space<vmem>>, vector<384x128xf32>
    %cst_49 = arith.constant dense<0.000000e+00> : vector<32x128xf32>
    %119 = tpu.matmul %117, %118, %cst_49 {dimension_numbers = #tpu.dot_dimension_numbers<[1], [0], [0], [1], [0, 0, 1, 1], [], []>} : vector<32x384xf32>, vector<384x128xf32>, vector<32x128xf32> -> vector<32x128xf32>
    %120 = arith.addf %119, %0 : vector<32x128xf32>
    %c0_50 = arith.constant 0 : index
    %c0_51 = arith.constant 0 : index
    %121 = vector.load %arg7[%c0_50, %c0_51] : memref<32x128xf32, #tpu.memory_space<vmem>>, vector<32x128xf32>
    tpu.vector_store %arg7[%c0_50, %c0_51], %120 {strides = array<i32>} : memref<32x128xf32, #tpu.memory_space<vmem>>, vector<32x128xf32>,
    return
  }
}

</mosaic_0001>

<llo_original>
// kernel: tpu_custom_call.1
$region0: #{tpu_custom_call.1}
  #allocation0 [shape = 'u32[]', space=smem, size = 0x4, offset = 0x4, fixed_abs, tag = 'smem constant byte address 0x4 - core index']
  #allocation1 [shape = 'u32[144,128]{1,0:T(1,128)}', space=vmem, size = 0x12000, scoped, tag = 'internal scratch']
  %s0 = inlined_call_operand.hbm [shape: f32[32,128], index: 0, kind: input, shape index: {}]
  %s1 = inlined_call_operand.vmem [shape: f32[1,128], index: 1, kind: input, shape index: {}]
  %s2 = inlined_call_operand.vmem [shape: f32[1,128], index: 2, kind: input, shape index: {}]
  %s3 = inlined_call_operand.hbm [shape: f32[384,128], index: 3, kind: input, shape index: {}]
  %s4 = inlined_call_operand.vmem [shape: f32[1,128], index: 4, kind: input, shape index: {}]
  %s5 = inlined_call_operand.vmem [shape: f32[1,128], index: 5, kind: input, shape index: {}]
  %s6 = inlined_call_operand.hbm [shape: f32[384,128], index: 6, kind: input, shape index: {}]
  %s7 = inlined_call_operand.hbm [shape: f32[32,128], index: 7, kind: output, shape index: {}]
  %s8 = sld [smem:[#allocation0]]
  $region50: #{tpu_custom_call.1} parent=0
    _
  %s10 = ssub.s32 1, %s8
  %s11 = scalar_select 0, %s10, %s8
  $region1: #{tpu_custom_call.1} parent=0
    #allocation2 [shape = 'u8[16384]{0}', space=vmem, size = 0x4000, scoped, tag = 'input window, operand 0, single buffered']
    #allocation3 [shape = 's32[1]{0}', space=sflag, size = 0x4, scoped, tag = 'scoped memory for tpu_custom_call.1']
    #allocation4 [shape = 's32[1]{0}', space=sflag, size = 0x4, scoped, tag = 'scoped memory for tpu_custom_call.1']
    #allocation5 [shape = 'u8[196608]{0}', space=vmem, size = 0x30000, scoped, tag = 'input window, operand 3, single buffered']
    #allocation6 [shape = 's32[1]{0}', space=sflag, size = 0x4, scoped, tag = 'scoped memory for tpu_custom_call.1']
    #allocation7 [shape = 'u8[196608]{0}', space=vmem, size = 0x30000, scoped, tag = 'input window, operand 6, single buffered']
    #allocation8 [shape = 'u8[16384]{0}', space=vmem, size = 0x4000, scoped, tag = 'output window, operand 0, single buffered']
    %12 = vsyncpa [#allocation3], 0
    %13 = vsyncpa [#allocation6], 0
    %14 = vsyncpa [#allocation4], 0
    // Predicated region
    $region2: #{tpu_custom_call.1} parent=1 // pred_check
      _
    $region3: #{tpu_custom_call.1} parent=1 // pred_check_branch
      %16 = sbr.rel (0) target = $region5
    $region4: #{tpu_custom_call.1} parent=1 // pred_region
      %s18 = ssub.s32 512, 512
      %19 = vsyncadd [#allocation3], %s18
      %s20 = sshll.u32 [#allocation2], 4
      %s21 = int_to_ptr.vmem [resolvable:$true] %s20
      %26 = dma.hbm_to_vmem [thread:$0]  %s0, 512, %s21, [#allocation3], 128, 128, 8
    $region5: #{tpu_custom_call.1} parent=1 // pred_fallthru
      _
    // Predicated region
    $region6: #{tpu_custom_call.1} parent=1 // pred_check
      _
    $region7: #{tpu_custom_call.1} parent=1 // pred_check_branch
      %28 = sbr.rel (0) target = $region9
    $region8: #{tpu_custom_call.1} parent=1 // pred_region
      _
    $region9: #{tpu_custom_call.1} parent=1 // pred_fallthru
      _
    // Predicated region
    $region10: #{tpu_custom_call.1} parent=1 // pred_check
      _
    $region11: #{tpu_custom_call.1} parent=1 // pred_check_branch
      %30 = sbr.rel (0) target = $region13
    $region12: #{tpu_custom_call.1} parent=1 // pred_region
      _
    $region13: #{tpu_custom_call.1} parent=1 // pred_fallthru
      _
    // Predicated region
    $region14: #{tpu_custom_call.1} parent=1 // pred_check
      _
    $region15: #{tpu_custom_call.1} parent=1 // pred_check_branch
      %32 = sbr.rel (0) target = $region17
    $region16: #{tpu_custom_call.1} parent=1 // pred_region
      %s34 = ssub.s32 6144, 6144
      %35 = vsyncadd [#allocation6], %s34
      %s36 = sshll.u32 [#allocation5], 4
      %s37 = int_to_ptr.vmem [resolvable:$true] %s36
      %42 = dma.hbm_to_vmem [thread:$0]  %s3, 6144, %s37, [#allocation6], 128, 128, 8
    $region17: #{tpu_custom_call.1} parent=1 // pred_fallthru
      _
    // Predicated region
    $region18: #{tpu_custom_call.1} parent=1 // pred_check
      _
    $region19: #{tpu_custom_call.1} parent=1 // pred_check_branch
      %44 = sbr.rel (0) target = $region21
    $region20: #{tpu_custom_call.1} parent=1 // pred_region
      _
    $region21: #{tpu_custom_call.1} parent=1 // pred_fallthru
      _
    // Predicated region
    $region22: #{tpu_custom_call.1} parent=1 // pred_check
      _
    $region23: #{tpu_custom_call.1} parent=1 // pred_check_branch
      %46 = sbr.rel (0) target = $region25
    $region24: #{tpu_custom_call.1} parent=1 // pred_region
      _
    $region25: #{tpu_custom_call.1} parent=1 // pred_fallthru
      _
    // Predicated region
    $region26: #{tpu_custom_call.1} parent=1 // pred_check
      _
    $region27: #{tpu_custom_call.1} parent=1 // pred_check_branch
      %48 = sbr.rel (0) target = $region29
    $region28: #{tpu_custom_call.1} parent=1 // pred_region
      %s50 = ssub.s32 6144, 6144
      %51 = vsyncadd [#allocation6], %s50
      %s52 = sshll.u32 [#allocation7], 4
      %s53 = int_to_ptr.vmem [resolvable:$true] %s52
      %58 = dma.hbm_to_vmem [thread:$0]  %s6, 6144, %s53, [#allocation6], 128, 128, 8
    $region29: #{tpu_custom_call.1} parent=1 // pred_fallthru
      _
    // Predicated region
    $region30: #{tpu_custom_call.1} parent=1 // pred_check
      _
    $region31: #{tpu_custom_call.1} parent=1 // pred_check_branch
      %60 = sbr.rel (0) target = $region33
    $region32: #{tpu_custom_call.1} parent=1 // pred_region
      %61 = dma.done [#allocation3], 512
    $region33: #{tpu_custom_call.1} parent=1 // pred_fallthru
      _
    // Predicated region
    $region34: #{tpu_custom_call.1} parent=1 // pred_check
      _
    $region35: #{tpu_custom_call.1} parent=1 // pred_check_branch
      %63 = sbr.rel (0) target = $region37
    $region36: #{tpu_custom_call.1} parent=1 // pred_region
      %64 = dma.done [#allocation6], 6144
    $region37: #{tpu_custom_call.1} parent=1 // pred_fallthru
      _
    // Predicated region
    $region38: #{tpu_custom_call.1} parent=1 // pred_check
      _
    $region39: #{tpu_custom_call.1} parent=1 // pred_check_branch
      %66 = sbr.rel (0) target = $region41
    $region40: #{tpu_custom_call.1} parent=1 // pred_region
      %67 = dma.done [#allocation6], 6144
    $region41: #{tpu_custom_call.1} parent=1 // pred_fallthru
      _
    %v68 = vld [vmem:[#allocation2] sm:$0xff]
    %v69 = vld [vmem:[#allocation2 + $0x8] sm:$0xff]
    %v70 = vld [vmem:[#allocation2 + $0x10] sm:$0xff]
    %v71 = vld [vmem:[#allocation2 + $0x18] sm:$0xff]
    %v72 = vlaneseq
    %v73 = vshrl.u32 %v72, 7
    %v74 = vadd.s32 %v73, 8
    %v75 = vadd.s32 %v73, 16
    %v76 = vadd.s32 %v73, 24
    %vm77 = vcmp.lt.s32.totalorder %v73, 0
    %v78 = vsub.s32 0, %v73
    %v79 = vsel %vm77, %v78, %v73
    %v80 = vshrl.u32 %v79, 4
    %v81 = vand.u32 %v79, 15
    %v82 = vsub.s32 0, %v81
    %v83 = vsel %vm77, %v82, %v81
    %vm84 = vcmp.lt.s32.totalorder %v74, 0
    %v85 = vsub.s32 0, %v74
    %v86 = vsel %vm84, %v85, %v74
    %v87 = vshrl.u32 %v86, 4
    %v88 = vand.u32 %v86, 15
    %v89 = vsub.s32 0, %v88
    %v90 = vsel %vm84, %v89, %v88
    %vm91 = vcmp.lt.s32.totalorder %v75, 0
    %v92 = vsub.s32 0, %v75
    %v93 = vsel %vm91, %v92, %v75
    %v94 = vshrl.u32 %v93, 4
    %v95 = vand.u32 %v93, 15
    %v96 = vsub.s32 0, %v95
    %v97 = vsel %vm91, %v96, %v95
    %vm98 = vcmp.lt.s32.totalorder %v76, 0
    %v99 = vsub.s32 0, %v76
    %v100 = vsel %vm98, %v99, %v76
    %v101 = vshrl.u32 %v100, 4
    %v102 = vand.u32 %v100, 15
    %v103 = vsub.s32 0, %v102
    %v104 = vsel %vm98, %v103, %v102
    %vm105 = vcmp.ne.s32.totalorder %v83, 0
    %vm106 = vcmp.ne.s32.totalorder %v90, 0
    %vm107 = vcmp.ne.s32.totalorder %v97, 0
    %vm108 = vcmp.ne.s32.totalorder %v104, 0
    %vm109 = vcmp.lt.s32.totalorder %v83, 0
    %vm110 = vcmp.lt.s32.totalorder %v90, 0
    %vm111 = vcmp.lt.s32.totalorder %v97, 0
    %vm112 = vcmp.lt.s32.totalorder %v104, 0
    %vm113 = vmand %vm109, %vm105
    %vm114 = vmand %vm110, %vm106
    %vm115 = vmand %vm111, %vm107
    %vm116 = vmand %vm112, %vm108
    %v117 = vadd.s32 %v83, 16
    %v118 = vadd.s32 %v90, 16
    %v119 = vadd.s32 %v97, 16
    %v120 = vadd.s32 %v104, 16
    %v121 = vsel %vm113, %v117, %v83
    %v122 = vsel %vm114, %v118, %v90
    %v123 = vsel %vm115, %v119, %v97
    %v124 = vsel %vm116, %v120, %v104
    %vm125 = vcmp.ne.s32.totalorder %v121, 0
    %vm126 = vcmp.ne.s32.totalorder %v122, 0
    %vm127 = vcmp.ne.s32.totalorder %v123, 0
    %vm128 = vcmp.ne.s32.totalorder %v124, 0
    %vm129 = vcmp.ne.s32.totalorder %v121, 15
    %vm130 = vcmp.ne.s32.totalorder %v122, 15
    %vm131 = vcmp.ne.s32.totalorder %v123, 15
    %vm132 = vcmp.ne.s32.totalorder %v124, 15
    %v133 = vld [vmem:[%s1] sm:$0x1]
    %v134 = vld [vmem:[%s2] sm:$0x1]
    %v135 = vadd.f32 %v68, %v69
    %v136 = vadd.f32 %v135, %v70
    %v137 = vadd.f32 %v136, %v71
    %v138 = vrot.slane %v137, 4
    %v139 = vadd.f32 %v137, %v138
    %v140 = vrot.slane %v139, 2
    %v141 = vadd.f32 %v139, %v140
    %v142 = vrot.slane %v141, 1
    %v143 = vadd.f32 %v141, %v142
    %144 = vrot.lane.b32.xlu0 %v143, 8
    %v145 = vpop.permute.xlu0 %144
    %v146 = vadd.f32 %v143, %v145
    %147 = vrot.lane.b32.xlu0 %v146, 16
    %v148 = vpop.permute.xlu0 %147
    %v149 = vadd.f32 %v146, %v148
    %150 = vrot.lane.b32.xlu0 %v149, 32
    %v151 = vpop.permute.xlu0 %150
    %v152 = vadd.f32 %v149, %v151
    %153 = vrot.lane.b32.xlu0 %v152, 64
    %v154 = vpop.permute.xlu0 %153
    %v155 = vadd.f32 %v152, %v154
    %v156 = vmul.f32 %v155, 0.001953125
    %v157 = vlaneseq
    %v158 = vshrl.u32 %v157, 7
    %v159 = vsub.s32 0, %v158
    %v160 = vrot.slane %v156, %v159
    %v161 = vsub.f32 %v68, %v160
    %v162 = vsub.f32 %v69, %v160
    %v163 = vsub.f32 %v70, %v160
    %v164 = vsub.f32 %v71, %v160
    %v165 = vmul.f32 %v161, %v161
    %v166 = vmul.f32 %v162, %v162
    %v167 = vmul.f32 %v163, %v163
    %v168 = vmul.f32 %v164, %v164
    %v169 = vadd.f32 %v165, %v166
    %v170 = vadd.f32 %v169, %v167
    %v171 = vadd.f32 %v170, %v168
    %v172 = vrot.slane %v171, 4
    %v173 = vadd.f32 %v171, %v172
    %v174 = vrot.slane %v173, 2
    %v175 = vadd.f32 %v173, %v174
    %v176 = vrot.slane %v175, 1
    %v177 = vadd.f32 %v175, %v176
    %178 = vrot.lane.b32.xlu0 %v177, 8
    %v179 = vpop.permute.xlu0 %178
    %v180 = vadd.f32 %v177, %v179
    %181 = vrot.lane.b32.xlu0 %v180, 16
    %v182 = vpop.permute.xlu0 %181
    %v183 = vadd.f32 %v180, %v182
    %184 = vrot.lane.b32.xlu0 %v183, 32
    %v185 = vpop.permute.xlu0 %184
    %v186 = vadd.f32 %v183, %v185
    %187 = vrot.lane.b32.xlu0 %v186, 64
    %v188 = vpop.permute.xlu0 %187
    %v189 = vadd.f32 %v186, %v188
    %v190 = vmul.f32 %v189, 0.001953125
    %v191 = vadd.f32 %v190, 1e-05
    %v192 = vrsqrt.pop %v191
    %v193 = vlaneseq
    %v194 = vshrl.u32 %v193, 7
    %v195 = vsub.s32 0, %v194
    %v196 = vrot.slane %v192, %v195
    %v197 = vmul.f32 %v161, %v196
    %v198 = vmul.f32 %v162, %v196
    %v199 = vmul.f32 %v163, %v196
    %v200 = vmul.f32 %v164, %v196
    %v202 = vlaneseq
    %v203 = vshrl.u32 %v202, 7
    %v204 = vsub.s32 0, %v203
    %v205 = vrot.slane %v133, %v204
    %v207 = vmul.f32 %v197, %v205
    %v208 = vmul.f32 %v198, %v205
    %v209 = vmul.f32 %v199, %v205
    %v210 = vmul.f32 %v200, %v205
    %v212 = vlaneseq
    %v213 = vshrl.u32 %v212, 7
    %v214 = vsub.s32 0, %v213
    %v215 = vrot.slane %v134, %v214
    %v217 = vadd.f32 %v207, %v215
    %v218 = vadd.f32 %v208, %v215
    %v219 = vadd.f32 %v209, %v215
    %v220 = vadd.f32 %v210, %v215
    %v221 = vmax.f32 %v217, 0.0
    %v222 = vmax.f32 %v218, 0.0
    %v223 = vmax.f32 %v219, 0.0
    %v224 = vmax.f32 %v220, 0.0
    %v225 = vrot.slane %v221, 7
    %v226 = vrot.slane %v222, 7
    %v227 = vrot.slane %v223, 7
    %v228 = vrot.slane %v224, 7
    %vm229 = vcmp.lt.s32.totalorder %v73, 1
    %v230 = vsel %vm229, %v227, %v228
    %v231 = vsel %vm229, %v226, %v227
    %v232 = vsel %vm229, %v225, %v226
    %v233 = vsel %vm229, %v228, %v225
    %v234 = vsel %vm125, %v233, 0.0
    %v235 = vsel %vm126, %v232, 0.0
    %v236 = vsel %vm127, %v231, 0.0
    %v237 = vsel %vm128, %v230, 0.0
    %v238 = vrot.slane %v221, 1
    %v239 = vrot.slane %v222, 1
    %v240 = vrot.slane %v223, 1
    %v241 = vrot.slane %v224, 1
    %vm242 = vcmp.lt.s32.totalorder %v73, 7
    %v243 = vsel %vm242, %v240, %v241
    %v244 = vsel %vm242, %v239, %v240
    %v245 = vsel %vm242, %v238, %v239
    %v246 = vsel %vm242, %v241, %v238
    %v247 = vsel %vm129, %v245, 0.0
    %v248 = vsel %vm130, %v244, 0.0
    %v249 = vsel %vm131, %v243, 0.0
    %v250 = vsel %vm132, %v246, 0.0
    %v251 = vld [vmem:[#allocation5] sm:$0xff]
    %v252 = vld [vmem:[#allocation5 + $0x8] sm:$0xff]
    %v253 = vld [vmem:[#allocation5 + $0x10] sm:$0xff]
    %v254 = vld [vmem:[#allocation5 + $0x18] sm:$0xff]
    %v255 = vld [vmem:[#allocation5 + $0x20] sm:$0xff]
    %v256 = vld [vmem:[#allocation5 + $0x28] sm:$0xff]
    %v257 = vld [vmem:[#allocation5 + $0x30] sm:$0xff]
    %v258 = vld [vmem:[#allocation5 + $0x38] sm:$0xff]
    %v259 = vld [vmem:[#allocation5 + $0x40] sm:$0xff]
    %v260 = vld [vmem:[#allocation5 + $0x48] sm:$0xff]
    %v261 = vld [vmem:[#allocation5 + $0x50] sm:$0xff]
    %v262 = vld [vmem:[#allocation5 + $0x58] sm:$0xff]
    %v263 = vld [vmem:[#allocation5 + $0x60] sm:$0xff]
    %v264 = vld [vmem:[#allocation5 + $0x68] sm:$0xff]
    %v265 = vld [vmem:[#allocation5 + $0x70] sm:$0xff]
    %v266 = vld [vmem:[#allocation5 + $0x78] sm:$0xff]
    %v267 = vld [vmem:[#allocation5 + $0x80] sm:$0xff]
    %v268 = vld [vmem:[#allocation5 + $0x88] sm:$0xff]
    %v269 = vld [vmem:[#allocation5 + $0x90] sm:$0xff]
    %v270 = vld [vmem:[#allocation5 + $0x98] sm:$0xff]
    %v271 = vld [vmem:[#allocation5 + $0xa0] sm:$0xff]
    %v272 = vld [vmem:[#allocation5 + $0xa8] sm:$0xff]
    %v273 = vld [vmem:[#allocation5 + $0xb0] sm:$0xff]
    %v274 = vld [vmem:[#allocation5 + $0xb8] sm:$0xff]
    %v275 = vld [vmem:[#allocation5 + $0xc0] sm:$0xff]
    %v276 = vld [vmem:[#allocation5 + $0xc8] sm:$0xff]
    %v277 = vld [vmem:[#allocation5 + $0xd0] sm:$0xff]
    %v278 = vld [vmem:[#allocation5 + $0xd8] sm:$0xff]
    %v279 = vld [vmem:[#allocation5 + $0xe0] sm:$0xff]
    %v280 = vld [vmem:[#allocation5 + $0xe8] sm:$0xff]
    %v281 = vld [vmem:[#allocation5 + $0xf0] sm:$0xff]
    %v282 = vld [vmem:[#allocation5 + $0xf8] sm:$0xff]
    %v283 = vld [vmem:[#allocation5 + $0x100] sm:$0xff]
    %v284 = vld [vmem:[#allocation5 + $0x108] sm:$0xff]
    %v285 = vld [vmem:[#allocation5 + $0x110] sm:$0xff]
    %v286 = vld [vmem:[#allocation5 + $0x118] sm:$0xff]
    %v287 = vld [vmem:[#allocation5 + $0x120] sm:$0xff]
    %v288 = vld [vmem:[#allocation5 + $0x128] sm:$0xff]
    %v289 = vld [vmem:[#allocation5 + $0x130] sm:$0xff]
    %v290 = vld [vmem:[#allocation5 + $0x138] sm:$0xff]
    %v291 = vld [vmem:[#allocation5 + $0x140] sm:$0xff]
    %v292 = vld [vmem:[#allocation5 + $0x148] sm:$0xff]
    %v293 = vld [vmem:[#allocation5 + $0x150] sm:$0xff]
    %v294 = vld [vmem:[#allocation5 + $0x158] sm:$0xff]
    %v295 = vld [vmem:[#allocation5 + $0x160] sm:$0xff]
    %v296 = vld [vmem:[#allocation5 + $0x168] sm:$0xff]
    %v297 = vld [vmem:[#allocation5 + $0x170] sm:$0xff]
    %v298 = vld [vmem:[#allocation5 + $0x178] sm:$0xff]
    %299 = vmatprep.subr.mxu0 0.0
    %300 = vmatpush1.msra.mxu0 %v251
    %301 = vmatprep.subr.mxu0 0.0
    %302 = vmatpush1.msra.mxu0 %v252
    %303 = vmatprep.subr.mxu0 0.0
    %304 = vmatpush1.msra.mxu0 %v253
    %305 = vmatprep.subr.mxu0 0.0
    %306 = vmatpush1.msra.mxu0 %v254
    %307 = vmatprep.subr.mxu0 0.0
    %308 = vmatpush1.msra.mxu0 %v255
    %309 = vmatprep.subr.mxu0 0.0
    %310 = vmatpush1.msra.mxu0 %v256
    %311 = vmatprep.subr.mxu0 0.0
    %312 = vmatpush1.msra.mxu0 %v257
    %313 = vmatprep.subr.mxu0 0.0
    %314 = vmatpush1.msra.mxu0 %v258
    %315 = vmatprep.subr.mxu0 0.0
    %316 = vmatpush1.msra.mxu0 %v259
    %317 = vmatprep.subr.mxu0 0.0
    %318 = vmatpush1.msra.mxu0 %v260
    %319 = vmatprep.subr.mxu0 0.0
    %320 = vmatpush1.msra.mxu0 %v261
    %321 = vmatprep.subr.mxu0 0.0
    %322 = vmatpush1.msra.mxu0 %v262
    %323 = vmatprep.subr.mxu0 0.0
    %324 = vmatpush1.msra.mxu0 %v263
    %325 = vmatprep.subr.mxu0 0.0
    %326 = vmatpush1.msra.mxu0 %v264
    %327 = vmatprep.subr.mxu0 0.0
    %328 = vmatpush1.msra.mxu0 %v265
    %329 = vmatprep.subr.mxu0 0.0
    %330 = vmatpush1.msra.mxu0 %v266
    %331 = vmatprep.subr.mxu0 0.0
    %332 = vmatpush1.msra.mxu0 %v267
    %333 = vmatprep.subr.mxu0 0.0
    %334 = vmatpush1.msra.mxu0 %v268
    %335 = vmatprep.subr.mxu0 0.0
    %336 = vmatpush1.msra.mxu0 %v269
    %337 = vmatprep.subr.mxu0 0.0
    %338 = vmatpush1.msra.mxu0 %v270
    %339 = vmatprep.subr.mxu0 0.0
    %340 = vmatpush1.msra.mxu0 %v271
    %341 = vmatprep.subr.mxu0 0.0
    %342 = vmatpush1.msra.mxu0 %v272
    %343 = vmatprep.subr.mxu0 0.0
    %344 = vmatpush1.msra.mxu0 %v273
    %345 = vmatprep.subr.mxu0 0.0
    %346 = vmatpush1.msra.mxu0 %v274
    %347 = vmatprep.subr.mxu0 0.0
    %348 = vmatpush1.msra.mxu0 %v275
    %349 = vmatprep.subr.mxu0 0.0
    %350 = vmatpush1.msra.mxu0 %v276
    %351 = vmatprep.subr.mxu0 0.0
    %352 = vmatpush1.msra.mxu0 %v277
    %353 = vmatprep.subr.mxu0 0.0
    %354 = vmatpush1.msra.mxu0 %v278
    %355 = vmatprep.subr.mxu0 0.0
    %356 = vmatpush1.msra.mxu0 %v279
    %357 = vmatprep.subr.mxu0 0.0
    %358 = vmatpush1.msra.mxu0 %v280
    %359 = vmatprep.subr.mxu0 0.0
    %360 = vmatpush1.msra.mxu0 %v281
    %361 = vmatprep.subr.mxu0 0.0
    %362 = vmatpush1.msra.mxu0 %v282
    %363 = vmatprep.mubr.f32.mxu0 %v221
    %364 = vmatmul.mubr.f32.gmra.mrb[0].mxu0 %v234
    %v365 = vpop.f32.mrb[0].mxu0
    %v366 = vadd.f32 0.0, %v365
    %v367 = vpop.f32.mrb[0].mxu0
    %368 = vmatprep.mubr.f32.mxu0 %v222
    %369 = vmatmul.mubr.f32.gmra.mrb[0].mxu0 %v235
    %v370 = vpop.f32.mrb[0].mxu0
    %v371 = vadd.f32 0.0, %v370
    %v372 = vpop.f32.mrb[0].mxu0
    %373 = vmatprep.mubr.f32.mxu0 %v223
    %374 = vmatmul.mubr.f32.gmra.mrb[0].mxu0 %v236
    %v375 = vpop.f32.mrb[0].mxu0
    %v376 = vadd.f32 0.0, %v375
    %v377 = vpop.f32.mrb[0].mxu0
    %378 = vmatprep.mubr.f32.mxu0 %v224
    %379 = vmatmul.mubr.f32.gmra.mrb[0].mxu0 %v237
    %v380 = vpop.f32.mrb[0].mxu0
    %v381 = vadd.f32 0.0, %v380
    %v382 = vpop.f32.mrb[0].mxu0
    %383 = vdwg.mxu0
    %384 = vmatprep.subr.mxu0 0.0
    %385 = vmatpush1.msra.mxu0 %v283
    %386 = vmatprep.subr.mxu0 0.0
    %387 = vmatpush1.msra.mxu0 %v284
    %388 = vmatprep.subr.mxu0 0.0
    %389 = vmatpush1.msra.mxu0 %v285
    %390 = vmatprep.subr.mxu0 0.0
    %391 = vmatpush1.msra.mxu0 %v286
    %392 = vmatprep.subr.mxu0 0.0
    %393 = vmatpush1.msra.mxu0 %v287
    %394 = vmatprep.subr.mxu0 0.0
    %395 = vmatpush1.msra.mxu0 %v288
    %396 = vmatprep.subr.mxu0 0.0
    %397 = vmatpush1.msra.mxu0 %v289
    %398 = vmatprep.subr.mxu0 0.0
    %399 = vmatpush1.msra.mxu0 %v290
    %400 = vmatprep.subr.mxu0 0.0
    %401 = vmatpush1.msra.mxu0 %v291
    %402 = vmatprep.subr.mxu0 0.0
    %403 = vmatpush1.msra.mxu0 %v292
    %404 = vmatprep.subr.mxu0 0.0
    %405 = vmatpush1.msra.mxu0 %v293
    %406 = vmatprep.subr.mxu0 0.0
    %407 = vmatpush1.msra.mxu0 %v294
    %408 = vmatprep.subr.mxu0 0.0
    %409 = vmatpush1.msra.mxu0 %v295
    %410 = vmatprep.subr.mxu0 0.0
    %411 = vmatpush1.msra.mxu0 %v296
    %412 = vmatprep.subr.mxu0 0.0
    %413 = vmatpush1.msra.mxu0 %v297
    %414 = vmatprep.subr.mxu0 0.0
    %415 = vmatpush1.msra.mxu0 %v298
    %416 = vmatprep.subr.mxu0 0.0
    %417 = vmatpush1.msra.mxu0 0.0
    %418 = vmatprep.subr.mxu0 0.0
    %419 = vmatpush1.msra.mxu0 0.0
    %420 = vmatprep.subr.mxu0 0.0
    %421 = vmatpush1.msra.mxu0 0.0
    %422 = vmatprep.subr.mxu0 0.0
    %423 = vmatpush1.msra.mxu0 0.0
    %424 = vmatprep.subr.mxu0 0.0
    %425 = vmatpush1.msra.mxu0 0.0
    %426 = vmatprep.subr.mxu0 0.0
    %427 = vmatpush1.msra.mxu0 0.0
    %428 = vmatprep.subr.mxu0 0.0
    %429 = vmatpush1.msra.mxu0 0.0
    %430 = vmatprep.subr.mxu0 0.0
    %431 = vmatpush1.msra.mxu0 0.0
    %432 = vmatprep.subr.mxu0 0.0
    %433 = vmatpush1.msra.mxu0 0.0
    %434 = vmatprep.subr.mxu0 0.0
    %435 = vmatpush1.msra.mxu0 0.0
    %436 = vmatprep.subr.mxu0 0.0
    %437 = vmatpush1.msra.mxu0 0.0
    %438 = vmatprep.subr.mxu0 0.0
    %439 = vmatpush1.msra.mxu0 0.0
    %440 = vmatprep.subr.mxu0 0.0
    %441 = vmatpush1.msra.mxu0 0.0
    %442 = vmatprep.subr.mxu0 0.0
    %443 = vmatpush1.msra.mxu0 0.0
    %444 = vmatprep.subr.mxu0 0.0
    %445 = vmatpush1.msra.mxu0 0.0
    %446 = vmatprep.subr.mxu0 0.0
    %447 = vmatpush1.msra.mxu0 0.0
    %448 = vmatprep.mubr.f32.mxu0 0.0
    %449 = vmatmul.mubr.f32.gmra.mrb[0].mxu0 %v247
    %v450 = vpop.f32.mrb[0].mxu0
    %v451 = vadd.f32 %v366, %v450
    %v452 = vpop.f32.mrb[0].mxu0
    %453 = vmatprep.mubr.f32.mxu0 0.0
    %454 = vmatmul.mubr.f32.gmra.mrb[0].mxu0 %v248
    %v455 = vpop.f32.mrb[0].mxu0
    %v456 = vadd.f32 %v371, %v455
    %v457 = vpop.f32.mrb[0].mxu0
    %458 = vmatprep.mubr.f32.mxu0 0.0
    %459 = vmatmul.mubr.f32.gmra.mrb[0].mxu0 %v249
    %v460 = vpop.f32.mrb[0].mxu0
    %v461 = vadd.f32 %v376, %v460
    %v462 = vpop.f32.mrb[0].mxu0
    %463 = vmatprep.mubr.f32.mxu0 0.0
    %464 = vmatmul.mubr.f32.gmra.mrb[0].mxu0 %v250
    %v465 = vpop.f32.mrb[0].mxu0
    %v466 = vadd.f32 %v381, %v465
    %v467 = vpop.f32.mrb[0].mxu0
    %468 = vdwg.mxu0
    %v469 = vld [vmem:[%s4] sm:$0x1]
    %v470 = vld [vmem:[%s5] sm:$0x1]
    %v471 = vadd.f32 %v451, %v456
    %v472 = vadd.f32 %v471, %v461
    %v473 = vadd.f32 %v472, %v466
    %v474 = vrot.slane %v473, 4
    %v475 = vadd.f32 %v473, %v474
    %v476 = vrot.slane %v475, 2
    %v477 = vadd.f32 %v475, %v476
    %v478 = vrot.slane %v477, 1
    %v479 = vadd.f32 %v477, %v478
    %480 = vrot.lane.b32.xlu0 %v479, 8
    %v481 = vpop.permute.xlu0 %480
    %v482 = vadd.f32 %v479, %v481
    %483 = vrot.lane.b32.xlu0 %v482, 16
    %v484 = vpop.permute.xlu0 %483
    %v485 = vadd.f32 %v482, %v484
    %486 = vrot.lane.b32.xlu0 %v485, 32
    %v487 = vpop.permute.xlu0 %486
    %v488 = vadd.f32 %v485, %v487
    %489 = vrot.lane.b32.xlu0 %v488, 64
    %v490 = vpop.permute.xlu0 %489
    %v491 = vadd.f32 %v488, %v490
    %v492 = vmul.f32 %v491, 0.001953125
    %v493 = vlaneseq
    %v494 = vshrl.u32 %v493, 7
    %v495 = vsub.s32 0, %v494
    %v496 = vrot.slane %v492, %v495
    %v497 = vsub.f32 %v451, %v496
    %v498 = vsub.f32 %v456, %v496
    %v499 = vsub.f32 %v461, %v496
    %v500 = vsub.f32 %v466, %v496
    %v501 = vmul.f32 %v497, %v497
    %v502 = vmul.f32 %v498, %v498
    %v503 = vmul.f32 %v499, %v499
    %v504 = vmul.f32 %v500, %v500
    %v505 = vadd.f32 %v501, %v502
    %v506 = vadd.f32 %v505, %v503
    %v507 = vadd.f32 %v506, %v504
    %v508 = vrot.slane %v507, 4
    %v509 = vadd.f32 %v507, %v508
    %v510 = vrot.slane %v509, 2
    %v511 = vadd.f32 %v509, %v510
    %v512 = vrot.slane %v511, 1
    %v513 = vadd.f32 %v511, %v512
    %514 = vrot.lane.b32.xlu0 %v513, 8
    %v515 = vpop.permute.xlu0 %514
    %v516 = vadd.f32 %v513, %v515
    %517 = vrot.lane.b32.xlu0 %v516, 16
    %v518 = vpop.permute.xlu0 %517
    %v519 = vadd.f32 %v516, %v518
    %520 = vrot.lane.b32.xlu0 %v519, 32
    %v521 = vpop.permute.xlu0 %520
    %v522 = vadd.f32 %v519, %v521
    %523 = vrot.lane.b32.xlu0 %v522, 64
    %v524 = vpop.permute.xlu0 %523
    %v525 = vadd.f32 %v522, %v524
    %v526 = vmul.f32 %v525, 0.001953125
    %v527 = vadd.f32 %v526, 1e-05
    %v528 = vrsqrt.pop %v527
    %v529 = vlaneseq
    %v530 = vshrl.u32 %v529, 7
    %v531 = vsub.s32 0, %v530
    %v532 = vrot.slane %v528, %v531
    %v533 = vmul.f32 %v497, %v532
    %v534 = vmul.f32 %v498, %v532
    %v535 = vmul.f32 %v499, %v532
    %v536 = vmul.f32 %v500, %v532
    %v538 = vlaneseq
    %v539 = vshrl.u32 %v538, 7
    %v540 = vsub.s32 0, %v539
    %v541 = vrot.slane %v469, %v540
    %v543 = vmul.f32 %v533, %v541
    %v544 = vmul.f32 %v534, %v541
    %v545 = vmul.f32 %v535, %v541
    %v546 = vmul.f32 %v536, %v541
    %v548 = vlaneseq
    %v549 = vshrl.u32 %v548, 7
    %v550 = vsub.s32 0, %v549
    %v551 = vrot.slane %v470, %v550
    %v553 = vadd.f32 %v543, %v551
    %v554 = vadd.f32 %v544, %v551
    %v555 = vadd.f32 %v545, %v551
    %v556 = vadd.f32 %v546, %v551
    %v557 = vmax.f32 %v553, 0.0
    %v558 = vmax.f32 %v554, 0.0
    %v559 = vmax.f32 %v555, 0.0
    %v560 = vmax.f32 %v556, 0.0
    %v561 = vrot.slane %v557, 7
    %v562 = vrot.slane %v558, 7
    %v563 = vrot.slane %v559, 7
    %v564 = vrot.slane %v560, 7
    %v565 = vsel %vm229, %v563, %v564
    %v566 = vsel %vm229, %v562, %v563
    %v567 = vsel %vm229, %v561, %v562
    %v568 = vsel %vm229, %v564, %v561
    %v569 = vsel %vm125, %v568, 0.0
    %v570 = vsel %vm126, %v567, 0.0
    %v571 = vsel %vm127, %v566, 0.0
    %v572 = vsel %vm128, %v565, 0.0
    %v573 = vrot.slane %v557, 1
    %v574 = vrot.slane %v558, 1
    %v575 = vrot.slane %v559, 1
    %v576 = vrot.slane %v560, 1
    %v577 = vsel %vm242, %v575, %v576
    %v578 = vsel %vm242, %v574, %v575
    %v579 = vsel %vm242, %v573, %v574
    %v580 = vsel %vm242, %v576, %v573
    %v581 = vsel %vm129, %v579, 0.0
    %v582 = vsel %vm130, %v578, 0.0
    %v583 = vsel %vm131, %v577, 0.0
    %v584 = vsel %vm132, %v580, 0.0
    %v585 = vld [vmem:[#allocation7] sm:$0xff]
    %v586 = vld [vmem:[#allocation7 + $0x8] sm:$0xff]
    %v587 = vld [vmem:[#allocation7 + $0x10] sm:$0xff]
    %v588 = vld [vmem:[#allocation7 + $0x18] sm:$0xff]
    %v589 = vld [vmem:[#allocation7 + $0x20] sm:$0xff]
    %v590 = vld [vmem:[#allocation7 + $0x28] sm:$0xff]
    %v591 = vld [vmem:[#allocation7 + $0x30] sm:$0xff]
    %v592 = vld [vmem:[#allocation7 + $0x38] sm:$0xff]
    %v593 = vld [vmem:[#allocation7 + $0x40] sm:$0xff]
    %v594 = vld [vmem:[#allocation7 + $0x48] sm:$0xff]
    %v595 = vld [vmem:[#allocation7 + $0x50] sm:$0xff]
    %v596 = vld [vmem:[#allocation7 + $0x58] sm:$0xff]
    %v597 = vld [vmem:[#allocation7 + $0x60] sm:$0xff]
    %v598 = vld [vmem:[#allocation7 + $0x68] sm:$0xff]
    %v599 = vld [vmem:[#allocation7 + $0x70] sm:$0xff]
    %v600 = vld [vmem:[#allocation7 + $0x78] sm:$0xff]
    %v601 = vld [vmem:[#allocation7 + $0x80] sm:$0xff]
    %v602 = vld [vmem:[#allocation7 + $0x88] sm:$0xff]
    %v603 = vld [vmem:[#allocation7 + $0x90] sm:$0xff]
    %v604 = vld [vmem:[#allocation7 + $0x98] sm:$0xff]
    %v605 = vld [vmem:[#allocation7 + $0xa0] sm:$0xff]
    %v606 = vld [vmem:[#allocation7 + $0xa8] sm:$0xff]
    %v607 = vld [vmem:[#allocation7 + $0xb0] sm:$0xff]
    %v608 = vld [vmem:[#allocation7 + $0xb8] sm:$0xff]
    %v609 = vld [vmem:[#allocation7 + $0xc0] sm:$0xff]
    %v610 = vld [vmem:[#allocation7 + $0xc8] sm:$0xff]
    %v611 = vld [vmem:[#allocation7 + $0xd0] sm:$0xff]
    %v612 = vld [vmem:[#allocation7 + $0xd8] sm:$0xff]
    %v613 = vld [vmem:[#allocation7 + $0xe0] sm:$0xff]
    %v614 = vld [vmem:[#allocation7 + $0xe8] sm:$0xff]
    %v615 = vld [vmem:[#allocation7 + $0xf0] sm:$0xff]
    %v616 = vld [vmem:[#allocation7 + $0xf8] sm:$0xff]
    %v617 = vld [vmem:[#allocation7 + $0x100] sm:$0xff]
    %v618 = vld [vmem:[#allocation7 + $0x108] sm:$0xff]
    %v619 = vld [vmem:[#allocation7 + $0x110] sm:$0xff]
    %v620 = vld [vmem:[#allocation7 + $0x118] sm:$0xff]
    %v621 = vld [vmem:[#allocation7 + $0x120] sm:$0xff]
    %v622 = vld [vmem:[#allocation7 + $0x128] sm:$0xff]
    %v623 = vld [vmem:[#allocation7 + $0x130] sm:$0xff]
    %v624 = vld [vmem:[#allocation7 + $0x138] sm:$0xff]
    %v625 = vld [vmem:[#allocation7 + $0x140] sm:$0xff]
    %v626 = vld [vmem:[#allocation7 + $0x148] sm:$0xff]
    %v627 = vld [vmem:[#allocation7 + $0x150] sm:$0xff]
    %v628 = vld [vmem:[#allocation7 + $0x158] sm:$0xff]
    %v629 = vld [vmem:[#allocation7 + $0x160] sm:$0xff]
    %v630 = vld [vmem:[#allocation7 + $0x168] sm:$0xff]
    %v631 = vld [vmem:[#allocation7 + $0x170] sm:$0xff]
    %v632 = vld [vmem:[#allocation7 + $0x178] sm:$0xff]
    %633 = vmatprep.subr.mxu0 0.0
    %634 = vmatpush1.msra.mxu0 %v585
    %635 = vmatprep.subr.mxu0 0.0
    %636 = vmatpush1.msra.mxu0 %v586
    %637 = vmatprep.subr.mxu0 0.0
    %638 = vmatpush1.msra.mxu0 %v587
    %639 = vmatprep.subr.mxu0 0.0
    %640 = vmatpush1.msra.mxu0 %v588
    %641 = vmatprep.subr.mxu0 0.0
    %642 = vmatpush1.msra.mxu0 %v589
    %643 = vmatprep.subr.mxu0 0.0
    %644 = vmatpush1.msra.mxu0 %v590
    %645 = vmatprep.subr.mxu0 0.0
    %646 = vmatpush1.msra.mxu0 %v591
    %647 = vmatprep.subr.mxu0 0.0
    %648 = vmatpush1.msra.mxu0 %v592
    %649 = vmatprep.subr.mxu0 0.0
    %650 = vmatpush1.msra.mxu0 %v593
    %651 = vmatprep.subr.mxu0 0.0
    %652 = vmatpush1.msra.mxu0 %v594
    %653 = vmatprep.subr.mxu0 0.0
    %654 = vmatpush1.msra.mxu0 %v595
    %655 = vmatprep.subr.mxu0 0.0
    %656 = vmatpush1.msra.mxu0 %v596
    %657 = vmatprep.subr.mxu0 0.0
    %658 = vmatpush1.msra.mxu0 %v597
    %659 = vmatprep.subr.mxu0 0.0
    %660 = vmatpush1.msra.mxu0 %v598
    %661 = vmatprep.subr.mxu0 0.0
    %662 = vmatpush1.msra.mxu0 %v599
    %663 = vmatprep.subr.mxu0 0.0
    %664 = vmatpush1.msra.mxu0 %v600
    %665 = vmatprep.subr.mxu0 0.0
    %666 = vmatpush1.msra.mxu0 %v601
    %667 = vmatprep.subr.mxu0 0.0
    %668 = vmatpush1.msra.mxu0 %v602
    %669 = vmatprep.subr.mxu0 0.0
    %670 = vmatpush1.msra.mxu0 %v603
    %671 = vmatprep.subr.mxu0 0.0
    %672 = vmatpush1.msra.mxu0 %v604
    %673 = vmatprep.subr.mxu0 0.0
    %674 = vmatpush1.msra.mxu0 %v605
    %675 = vmatprep.subr.mxu0 0.0
    %676 = vmatpush1.msra.mxu0 %v606
    %677 = vmatprep.subr.mxu0 0.0
    %678 = vmatpush1.msra.mxu0 %v607
    %679 = vmatprep.subr.mxu0 0.0
    %680 = vmatpush1.msra.mxu0 %v608
    %681 = vmatprep.subr.mxu0 0.0
    %682 = vmatpush1.msra.mxu0 %v609
    %683 = vmatprep.subr.mxu0 0.0
    %684 = vmatpush1.msra.mxu0 %v610
    %685 = vmatprep.subr.mxu0 0.0
    %686 = vmatpush1.msra.mxu0 %v611
    %687 = vmatprep.subr.mxu0 0.0
    %688 = vmatpush1.msra.mxu0 %v612
    %689 = vmatprep.subr.mxu0 0.0
    %690 = vmatpush1.msra.mxu0 %v613
    %691 = vmatprep.subr.mxu0 0.0
    %692 = vmatpush1.msra.mxu0 %v614
    %693 = vmatprep.subr.mxu0 0.0
    %694 = vmatpush1.msra.mxu0 %v615
    %695 = vmatprep.subr.mxu0 0.0
    %696 = vmatpush1.msra.mxu0 %v616
    %697 = vmatprep.mubr.f32.mxu0 %v557
    %698 = vmatmul.mubr.f32.gmra.mrb[0].mxu0 %v569
    %v699 = vpop.f32.mrb[0].mxu0
    %v700 = vadd.f32 %v68, %v699
    %v701 = vpop.f32.mrb[0].mxu0
    %702 = vmatprep.mubr.f32.mxu0 %v558
    %703 = vmatmul.mubr.f32.gmra.mrb[0].mxu0 %v570
    %v704 = vpop.f32.mrb[0].mxu0
    %v705 = vadd.f32 %v69, %v704
    %v706 = vpop.f32.mrb[0].mxu0
    %707 = vmatprep.mubr.f32.mxu0 %v559
    %708 = vmatmul.mubr.f32.gmra.mrb[0].mxu0 %v571
    %v709 = vpop.f32.mrb[0].mxu0
    %v710 = vadd.f32 %v70, %v709
    %v711 = vpop.f32.mrb[0].mxu0
    %712 = vmatprep.mubr.f32.mxu0 %v560
    %713 = vmatmul.mubr.f32.gmra.mrb[0].mxu0 %v572
    %v714 = vpop.f32.mrb[0].mxu0
    %v715 = vadd.f32 %v71, %v714
    %v716 = vpop.f32.mrb[0].mxu0
    %717 = vdwg.mxu0
    %718 = vmatprep.subr.mxu0 0.0
    %719 = vmatpush1.msra.mxu0 %v617
    %720 = vmatprep.subr.mxu0 0.0
    %721 = vmatpush1.msra.mxu0 %v618
    %722 = vmatprep.subr.mxu0 0.0
    %723 = vmatpush1.msra.mxu0 %v619
    %724 = vmatprep.subr.mxu0 0.0
    %725 = vmatpush1.msra.mxu0 %v620
    %726 = vmatprep.subr.mxu0 0.0
    %727 = vmatpush1.msra.mxu0 %v621
    %728 = vmatprep.subr.mxu0 0.0
    %729 = vmatpush1.msra.mxu0 %v622
    %730 = vmatprep.subr.mxu0 0.0
    %731 = vmatpush1.msra.mxu0 %v623
    %732 = vmatprep.subr.mxu0 0.0
    %733 = vmatpush1.msra.mxu0 %v624
    %734 = vmatprep.subr.mxu0 0.0
    %735 = vmatpush1.msra.mxu0 %v625
    %736 = vmatprep.subr.mxu0 0.0
    %737 = vmatpush1.msra.mxu0 %v626
    %738 = vmatprep.subr.mxu0 0.0
    %739 = vmatpush1.msra.mxu0 %v627
    %740 = vmatprep.subr.mxu0 0.0
    %741 = vmatpush1.msra.mxu0 %v628
    %742 = vmatprep.subr.mxu0 0.0
    %743 = vmatpush1.msra.mxu0 %v629
    %744 = vmatprep.subr.mxu0 0.0
    %745 = vmatpush1.msra.mxu0 %v630
    %746 = vmatprep.subr.mxu0 0.0
    %747 = vmatpush1.msra.mxu0 %v631
    %748 = vmatprep.subr.mxu0 0.0
    %749 = vmatpush1.msra.mxu0 %v632
    %750 = vmatprep.subr.mxu0 0.0
    %751 = vmatpush1.msra.mxu0 0.0
    %752 = vmatprep.subr.mxu0 0.0
    %753 = vmatpush1.msra.mxu0 0.0
    %754 = vmatprep.subr.mxu0 0.0
    %755 = vmatpush1.msra.mxu0 0.0
    %756 = vmatprep.subr.mxu0 0.0
    %757 = vmatpush1.msra.mxu0 0.0
    %758 = vmatprep.subr.mxu0 0.0
    %759 = vmatpush1.msra.mxu0 0.0
    %760 = vmatprep.subr.mxu0 0.0
    %761 = vmatpush1.msra.mxu0 0.0
    %762 = vmatprep.subr.mxu0 0.0
    %763 = vmatpush1.msra.mxu0 0.0
    %764 = vmatprep.subr.mxu0 0.0
    %765 = vmatpush1.msra.mxu0 0.0
    %766 = vmatprep.subr.mxu0 0.0
    %767 = vmatpush1.msra.mxu0 0.0
    %768 = vmatprep.subr.mxu0 0.0
    %769 = vmatpush1.msra.mxu0 0.0
    %770 = vmatprep.subr.mxu0 0.0
    %771 = vmatpush1.msra.mxu0 0.0
    %772 = vmatprep.subr.mxu0 0.0
    %773 = vmatpush1.msra.mxu0 0.0
    %774 = vmatprep.subr.mxu0 0.0
    %775 = vmatpush1.msra.mxu0 0.0
    %776 = vmatprep.subr.mxu0 0.0
    %777 = vmatpush1.msra.mxu0 0.0
    %778 = vmatprep.subr.mxu0 0.0
    %779 = vmatpush1.msra.mxu0 0.0
    %780 = vmatprep.subr.mxu0 0.0
    %781 = vmatpush1.msra.mxu0 0.0
    %782 = vmatprep.mubr.f32.mxu0 0.0
    %783 = vmatmul.mubr.f32.gmra.mrb[0].mxu0 %v581
    %v784 = vpop.f32.mrb[0].mxu0
    %v785 = vadd.f32 %v700, %v784
    %v786 = vpop.f32.mrb[0].mxu0
    %787 = vmatprep.mubr.f32.mxu0 0.0
    %788 = vmatmul.mubr.f32.gmra.mrb[0].mxu0 %v582
    %v789 = vpop.f32.mrb[0].mxu0
    %v790 = vadd.f32 %v705, %v789
    %v791 = vpop.f32.mrb[0].mxu0
    %792 = vmatprep.mubr.f32.mxu0 0.0
    %793 = vmatmul.mubr.f32.gmra.mrb[0].mxu0 %v583
    %v794 = vpop.f32.mrb[0].mxu0
    %v795 = vadd.f32 %v710, %v794
    %v796 = vpop.f32.mrb[0].mxu0
    %797 = vmatprep.mubr.f32.mxu0 0.0
    %798 = vmatmul.mubr.f32.gmra.mrb[0].mxu0 %v584
    %v799 = vpop.f32.mrb[0].mxu0
    %v800 = vadd.f32 %v715, %v799
    %v801 = vpop.f32.mrb[0].mxu0
    %802 = vdwg.mxu0
    %803 = vst [vmem:[#allocation8] sm:$0xff] %v785
    %804 = vst [vmem:[#allocation8 + $0x8] sm:$0xff] %v790
    %805 = vst [vmem:[#allocation8 + $0x10] sm:$0xff] %v795
    %806 = vst [vmem:[#allocation8 + $0x18] sm:$0xff] %v800
    // Predicated region
    $region42: #{tpu_custom_call.1} parent=1 // pred_check
      _
    $region43: #{tpu_custom_call.1} parent=1 // pred_check_branch
      %808 = sbr.rel (0) target = $region45
    $region44: #{tpu_custom_call.1} parent=1 // pred_region
      %s810 = ssub.s32 512, 512
      %811 = vsyncadd [#allocation4], %s810
      %s812 = sshll.u32 [#allocation8], 4
      %s813 = int_to_ptr.vmem [resolvable:$true] %s812
      %818 = dma.vmem_to_hbm [thread:$0]  %s813, 512, %s7, [#allocation4], 128, 128, 8
    $region45: #{tpu_custom_call.1} parent=1 // pred_fallthru
      _
    // Predicated region
    $region46: #{tpu_custom_call.1} parent=1 // pred_check
      _
    $region47: #{tpu_custom_call.1} parent=1 // pred_check_branch
      %820 = sbr.rel (0) target = $region49
    $region48: #{tpu_custom_call.1} parent=1 // pred_region
      %821 = dma.done [#allocation4], 512
    $region49: #{tpu_custom_call.1} parent=1 // pred_fallthru
      _
    %822 = vsyncpa [#allocation3], 1
    %823 = vsyncpa [#allocation6], 1
    %824 = vsyncpa [#allocation4], 1

</llo_original>
